<compile_context>
chip_gen: v7x
topology: tpu7x:2x2x1
jax: 0.10.0
libtpu: 0.0.40
codegen_flags: <defaults>
</compile_context>

<pallas_src>
import jax
import jax.numpy as jnp
from jax import lax
from jax.experimental import pallas as pl
from jax.experimental.pallas import tpu as pltpu


def _round_up(n, m):
    return ((n + m - 1) // m) * m


def _make_kernel(tb, l_pad, latent, b_true, mm_dtype):
    def kernel(x_ref, w1_ref, b1_ref, w2_ref, b2_ref, w34_ref, b34_ref,
               eps_ref, z_ref, kl_ref):
        # linear1 + relu (MXU in mm_dtype, f32 accumulation / elementwise)
        h1 = jnp.dot(x_ref[...], w1_ref[...],
                     preferred_element_type=jnp.float32) + b1_ref[...]
        h1 = jnp.maximum(h1, 0.0).astype(mm_dtype)

        # linear2 + relu
        h2 = jnp.dot(h1, w2_ref[...],
                     preferred_element_type=jnp.float32) + b2_ref[...]
        h2 = jnp.maximum(h2, 0.0).astype(mm_dtype)

        # fused linear3|linear4 -> [mu | log_sigma], each half lane-padded to 128
        proj = jnp.dot(h2, w34_ref[...],
                       preferred_element_type=jnp.float32) + b34_ref[...]
        mu = proj[:, :l_pad]
        log_sigma = proj[:, l_pad:]
        sigma = jnp.exp(log_sigma)

        # reparameterization: z = mu + sigma * eps  (lane-dense 128-wide store)
        z_ref[...] = mu + sigma * eps_ref[...]

        # per-block partial KL, masked to valid (row, lane) region
        row = lax.broadcasted_iota(jnp.int32, (tb, l_pad), 0) + pl.program_id(0) * tb
        lane = lax.broadcasted_iota(jnp.int32, (tb, l_pad), 1)
        valid = (row < b_true) & (lane < latent)
        kl_terms = sigma * sigma + mu * mu - log_sigma - 0.5
        kl_ref[0, 0] = jnp.sum(jnp.where(valid, kl_terms, 0.0))

    return kernel


def variational_encoder_anomalous(x, params, eps, *, block_rows=256,
                                  matmul_dtype=jnp.bfloat16):
    """x: (B, embed) f32. params: transposed weights/biases. eps: (B, latent) f32.

    Returns (z, kl) matching the PyTorch module's forward (z) and self.kl.
    """
    x = x.astype(jnp.float32)
    eps = eps.astype(jnp.float32)
    B, embed = x.shape
    hid = params["w1"].shape[1]
    latent = params["w3"].shape[1]

    l_pad = _round_up(latent, 128)            # lane-dense output width
    tb = min(block_rows, _round_up(B, 8))     # batch tile (rows)
    b_pad = _round_up(B, tb)
    nb = b_pad // tb

    # Pad batch (x, eps) and lane-pad latent (eps) with zeros.
    x_p = jnp.pad(x, ((0, b_pad - B), (0, 0)))
    eps_p = jnp.pad(eps, ((0, b_pad - B), (0, l_pad - latent)))

    # Fuse linear3 | linear4 into one (hid, 2*l_pad) projection (zero-padded).
    pad_cols = lambda a: jnp.pad(a, ((0, 0), (0, l_pad - a.shape[1])))
    w34 = jnp.concatenate([pad_cols(params["w3"]), pad_cols(params["w4"])], axis=1)
    b34 = jnp.concatenate([pad_cols(params["b3"]), pad_cols(params["b4"])], axis=1)

    # MXU inputs in matmul_dtype; biases / elementwise stay f32.
    x_mm = x_p.astype(matmul_dtype)
    w1 = params["w1"].astype(matmul_dtype)
    w2 = params["w2"].astype(matmul_dtype)
    w34 = w34.astype(matmul_dtype)
    b1 = params["b1"].astype(jnp.float32)
    b2 = params["b2"].astype(jnp.float32)
    b34 = b34.astype(jnp.float32)

    kernel = _make_kernel(tb, l_pad, latent, B, matmul_dtype)

    grid_spec = pltpu.PrefetchScalarGridSpec(
        num_scalar_prefetch=0,
        grid=(nb,),
        in_specs=[
            pl.BlockSpec((tb, embed), lambda i: (i, 0)),        # x   (streamed)
            pl.BlockSpec((embed, hid), lambda i: (0, 0)),       # w1  (resident)
            pl.BlockSpec((1, hid), lambda i: (0, 0)),           # b1
            pl.BlockSpec((hid, hid), lambda i: (0, 0)),         # w2
            pl.BlockSpec((1, hid), lambda i: (0, 0)),           # b2
            pl.BlockSpec((hid, 2 * l_pad), lambda i: (0, 0)),   # w3|w4 fused
            pl.BlockSpec((1, 2 * l_pad), lambda i: (0, 0)),     # b3|b4 fused
            pl.BlockSpec((tb, l_pad), lambda i: (i, 0)),        # eps (streamed)
        ],
        out_specs=(
            pl.BlockSpec((tb, l_pad), lambda i: (i, 0)),                       # z
            pl.BlockSpec((1, 1), lambda i: (i, 0), memory_space=pltpu.SMEM),   # kl partials
        ),
    )

    z_pad, kl_parts = pl.pallas_call(
        kernel,
        grid_spec=grid_spec,
        out_shape=(
            jax.ShapeDtypeStruct((b_pad, l_pad), jnp.float32),
            jax.ShapeDtypeStruct((nb, 1), jnp.float32),
        ),
        compiler_params=pltpu.CompilerParams(
            dimension_semantics=("parallel",)),
    )(x_mm, w1, b1, w2, b2, w34, b34, eps_p)

    z = z_pad[:B, :latent]
    kl = jnp.sum(kl_parts)
    return z, kl


def init_params(key, embed_size, latent_dims):
    """Deterministic init mimicking nn.Linear (uniform +-1/sqrt(fan_in)).
    Weights stored transposed to (in, out); biases as (1, out)."""
    hid = embed_size // 2

    def linear(k, fan_in, fan_out):
        kw, kb = jax.random.split(k)
        bound = 1.0 / jnp.sqrt(fan_in)
        w = jax.random.uniform(kw, (fan_in, fan_out), jnp.float32, -bound, bound)
        b = jax.random.uniform(kb, (1, fan_out), jnp.float32, -bound, bound)
        return w, b

    k1, k2, k3, k4 = jax.random.split(key, 4)
    w1, b1 = linear(k1, embed_size, hid)
    w2, b2 = linear(k2, hid, hid)
    w3, b3 = linear(k3, hid, latent_dims)
    w4, b4 = linear(k4, hid, latent_dims)
    return dict(w1=w1, b1=b1, w2=w2, b2=b2, w3=w3, b3=b3, w4=w4, b4=b4)


def reference(x, params, eps, matmul_dtype=jnp.float32):
    """Pure-JAX reference mirroring the PyTorch forward (with the same MXU-dtype cast)."""
    c = lambda a: a.astype(matmul_dtype)
    dot = lambda a, b: jnp.dot(c(a), c(b), preferred_element_type=jnp.float32)
    relu = lambda v: jnp.maximum(v, 0.0)
    h1 = relu(dot(x, params["w1"]) + params["b1"])
    h2 = relu(dot(h1, params["w2"]) + params["b2"])
    mu = dot(h2, params["w3"]) + params["b3"]
    log_sigma = dot(h2, params["w4"]) + params["b4"]
    sigma = jnp.exp(log_sigma)
    z = mu + sigma * eps
    kl = jnp.sum(sigma ** 2 + mu ** 2 - log_sigma - 0.5)
    return z, kl


if __name__ == "__main__":
    embed_size = 32
    latent_dims = 8
    batch = 8

    key = jax.random.PRNGKey(0)
    k_param, k_x, k_eps = jax.random.split(key, 3)

    params = init_params(k_param, embed_size, latent_dims)
    x = jax.random.normal(k_x, (batch, embed_size), jnp.float32)
    # The N(0,1) sample from torch.distributions.Normal is drawn here
    # deterministically and passed into the kernel.
    eps = jax.random.normal(k_eps, (batch, latent_dims), jnp.float32)

    # Exact f32 path: matches the PyTorch module semantics tightly.
    z32, kl32 = variational_encoder_anomalous(x, params, eps,
                                              matmul_dtype=jnp.float32)
    z32 = jax.block_until_ready(z32)
    kl32 = jax.block_until_ready(kl32)
    z_ref32, kl_ref32 = reference(x, params, eps, matmul_dtype=jnp.float32)
    assert jnp.allclose(z32, z_ref32, atol=1e-5, rtol=1e-5)
    assert jnp.allclose(kl32, kl_ref32, atol=1e-4, rtol=1e-5)

    # Fast bf16-MXU path (default): compared against an identically-cast reference.
    z, kl = variational_encoder_anomalous(x, params, eps)
    z = jax.block_until_ready(z)
    kl = jax.block_until_ready(kl)
    z_ref, kl_ref = reference(x, params, eps, matmul_dtype=jnp.bfloat16)
    assert jnp.allclose(z, z_ref, atol=1e-4, rtol=1e-4)
    assert jnp.allclose(kl, kl_ref, atol=1e-2, rtol=1e-3)

    print("KERNEL_OK")
</pallas_src>

<mosaic_0001>
module attributes {stable_mosaic.version = 11 : i64} {
  func.func @kernel(%arg0: i32, %arg1: memref<8x32xf32, #tpu.memory_space<vmem>>, %arg2: memref<32x16xf32, #tpu.memory_space<vmem>>, %arg3: memref<1x16xf32, #tpu.memory_space<vmem>>, %arg4: memref<16x16xf32, #tpu.memory_space<vmem>>, %arg5: memref<1x16xf32, #tpu.memory_space<vmem>>, %arg6: memref<16x256xf32, #tpu.memory_space<vmem>>, %arg7: memref<1x256xf32, #tpu.memory_space<vmem>>, %arg8: memref<8x128xf32, #tpu.memory_space<vmem>>, %arg9: memref<8x128xf32, #tpu.memory_space<vmem>>, %arg10: memref<1x1xf32, #tpu.memory_space<smem>>) attributes {dimension_semantics = [#tpu.dimension_semantics<parallel>], iteration_bounds = array<i64: 1>, scalar_prefetch = 0 : i64, scratch_operands = 0 : i64, tpu.core_type = #tpu.core_type<tc>, window_params = [{transform_indices = @transform_0, window_bounds = array<i64: 8, 32>}, {pipeline_mode = #tpu.pipeline_mode<synchronous>, transform_indices = @transform_1, window_bounds = array<i64: 32, 16>}, {pipeline_mode = #tpu.pipeline_mode<synchronous>, transform_indices = @transform_2, window_bounds = array<i64: 1, 16>}, {pipeline_mode = #tpu.pipeline_mode<synchronous>, transform_indices = @transform_3, window_bounds = array<i64: 16, 16>}, {pipeline_mode = #tpu.pipeline_mode<synchronous>, transform_indices = @transform_4, window_bounds = array<i64: 1, 16>}, {pipeline_mode = #tpu.pipeline_mode<synchronous>, transform_indices = @transform_5, window_bounds = array<i64: 16, 256>}, {pipeline_mode = #tpu.pipeline_mode<synchronous>, transform_indices = @transform_6, window_bounds = array<i64: 1, 256>}, {transform_indices = @transform_7, window_bounds = array<i64: 8, 128>}, {transform_indices = @transform_8, window_bounds = array<i64: 8, 128>}, {transform_indices = @transform_9, window_bounds = array<i64: 1, 1>}]} {
    %c0 = arith.constant 0 : index
    %c0_0 = arith.constant 0 : index
    %0 = vector.load %arg1[%c0, %c0_0] : memref<8x32xf32, #tpu.memory_space<vmem>>, vector<8x32xf32>
    %c0_1 = arith.constant 0 : index
    %c0_2 = arith.constant 0 : index
    %1 = vector.load %arg2[%c0_1, %c0_2] : memref<32x16xf32, #tpu.memory_space<vmem>>, vector<32x16xf32>
    %cst = arith.constant dense<0.000000e+00> : vector<8x16xf32>
    %2 = tpu.matmul %0, %1, %cst {dimension_numbers = #tpu.dot_dimension_numbers<[1], [0], [0], [1], [0, 0, 1, 1], [], []>} : vector<8x32xf32>, vector<32x16xf32>, vector<8x16xf32> -> vector<8x16xf32>
    %c0_3 = arith.constant 0 : index
    %c0_4 = arith.constant 0 : index
    %3 = vector.load %arg3[%c0_3, %c0_4] : memref<1x16xf32, #tpu.memory_space<vmem>>, vector<1x16xf32>
    %4 = vector.broadcast %3 : vector<1x16xf32> to vector<8x16xf32>
    %5 = arith.addf %2, %4 : vector<8x16xf32>
    %cst_5 = arith.constant 0.000000e+00 : f32
    %6 = vector.broadcast %cst_5 : f32 to vector<8x16xf32>
    %7 = arith.maximumf %5, %6 : vector<8x16xf32>
    %c0_6 = arith.constant 0 : index
    %c0_7 = arith.constant 0 : index
    %8 = vector.load %arg4[%c0_6, %c0_7] : memref<16x16xf32, #tpu.memory_space<vmem>>, vector<16x16xf32>
    %cst_8 = arith.constant dense<0.000000e+00> : vector<8x16xf32>
    %9 = tpu.matmul %7, %8, %cst_8 {dimension_numbers = #tpu.dot_dimension_numbers<[1], [0], [0], [1], [0, 0, 1, 1], [], []>} : vector<8x16xf32>, vector<16x16xf32>, vector<8x16xf32> -> vector<8x16xf32>
    %c0_9 = arith.constant 0 : index
    %c0_10 = arith.constant 0 : index
    %10 = vector.load %arg5[%c0_9, %c0_10] : memref<1x16xf32, #tpu.memory_space<vmem>>, vector<1x16xf32>
    %11 = vector.broadcast %10 : vector<1x16xf32> to vector<8x16xf32>
    %12 = arith.addf %9, %11 : vector<8x16xf32>
    %cst_11 = arith.constant 0.000000e+00 : f32
    %13 = vector.broadcast %cst_11 : f32 to vector<8x16xf32>
    %14 = arith.maximumf %12, %13 : vector<8x16xf32>
    %c0_12 = arith.constant 0 : index
    %c0_13 = arith.constant 0 : index
    %15 = vector.load %arg6[%c0_12, %c0_13] : memref<16x256xf32, #tpu.memory_space<vmem>>, vector<16x256xf32>
    %cst_14 = arith.constant dense<0.000000e+00> : vector<8x256xf32>
    %16 = tpu.matmul %14, %15, %cst_14 {dimension_numbers = #tpu.dot_dimension_numbers<[1], [0], [0], [1], [0, 0, 1, 1], [], []>} : vector<8x16xf32>, vector<16x256xf32>, vector<8x256xf32> -> vector<8x256xf32>
    %c0_15 = arith.constant 0 : index
    %c0_16 = arith.constant 0 : index
    %17 = vector.load %arg7[%c0_15, %c0_16] : memref<1x256xf32, #tpu.memory_space<vmem>>, vector<1x256xf32>
    %18 = vector.broadcast %17 : vector<1x256xf32> to vector<8x256xf32>
    %19 = arith.addf %16, %18 : vector<8x256xf32>
    %20 = vector.extract_strided_slice %19 {offsets = [0, 0], sizes = [8, 128], strides = [1, 1]} : vector<8x256xf32> to vector<8x128xf32>
    %21 = vector.extract_strided_slice %19 {offsets = [0, 128], sizes = [8, 128], strides = [1, 1]} : vector<8x256xf32> to vector<8x128xf32>
    %22 = math.exp %21 : vector<8x128xf32>
    %c0_17 = arith.constant 0 : index
    %c0_18 = arith.constant 0 : index
    %23 = vector.load %arg8[%c0_17, %c0_18] : memref<8x128xf32, #tpu.memory_space<vmem>>, vector<8x128xf32>
    %24 = arith.mulf %22, %23 : vector<8x128xf32>
    %25 = arith.addf %20, %24 : vector<8x128xf32>
    %c0_19 = arith.constant 0 : index
    %c0_20 = arith.constant 0 : index
    %26 = vector.load %arg9[%c0_19, %c0_20] : memref<8x128xf32, #tpu.memory_space<vmem>>, vector<8x128xf32>
    tpu.vector_store %arg9[%c0_19, %c0_20], %25 {strides = array<i32>} : memref<8x128xf32, #tpu.memory_space<vmem>>, vector<8x128xf32>,
    %27 = tpu.iota {dimensions = array<i32: 0>} : vector<8x128xi32>
    %c8_i32 = arith.constant 8 : i32
    %28 = arith.muli %arg0, %c8_i32 : i32
    %29 = vector.broadcast %28 : i32 to vector<8x128xi32>
    %30 = arith.addi %27, %29 : vector<8x128xi32>
    %31 = tpu.iota {dimensions = array<i32: 1>} : vector<8x128xi32>
    %c8_i32_21 = arith.constant 8 : i32
    %32 = vector.broadcast %c8_i32_21 : i32 to vector<8x128xi32>
    %33 = arith.cmpi slt, %30, %32 : vector<8x128xi32>
    %c8_i32_22 = arith.constant 8 : i32
    %34 = vector.broadcast %c8_i32_22 : i32 to vector<8x128xi32>
    %35 = arith.cmpi slt, %31, %34 : vector<8x128xi32>
    %36 = arith.andi %33, %35 : vector<8x128xi1>
    %37 = arith.mulf %22, %22 : vector<8x128xf32>
    %38 = arith.mulf %20, %20 : vector<8x128xf32>
    %39 = arith.addf %37, %38 : vector<8x128xf32>
    %40 = arith.subf %39, %21 : vector<8x128xf32>
    %cst_23 = arith.constant 5.000000e-01 : f32
    %41 = vector.broadcast %cst_23 : f32 to vector<8x128xf32>
    %42 = arith.subf %40, %41 : vector<8x128xf32>
    %cst_24 = arith.constant 0.000000e+00 : f32
    %43 = vector.broadcast %cst_24 : f32 to vector<8x128xf32>
    %44 = arith.select %36, %42, %43 : vector<8x128xi1>, vector<8x128xf32>
    %45 = vector.shape_cast %44 : vector<8x128xf32> to vector<1x8x128xf32>
    %cst_25 = arith.constant dense<0.000000e+00> : vector<1xf32>
    %46 = vector.multi_reduction <add>, %45, %cst_25 [1, 2] : vector<1x8x128xf32> to vector<1xf32>
    %47 = vector.shape_cast %46 : vector<1xf32> to vector<1x1x1xf32>
    %48 = vector.extract %47[0, 0, 0] : f32 from vector<1x1x1xf32>
    %c0_26 = arith.constant 0 : index
    %c0_27 = arith.constant 0 : index
    %49 = memref.load %arg10[%c0_26, %c0_27] : memref<1x1xf32, #tpu.memory_space<smem>>
    memref.store %48, %arg10[%c0_26, %c0_27] : memref<1x1xf32, #tpu.memory_space<smem>>
    return
  }
  func.func @transform_0(%arg0: i32) -> (i32, i32) {
    %c0_i32 = arith.constant 0 : i32
    %c0_i32_0 = arith.constant 0 : i32
    return %arg0, %c0_i32 : i32, i32
  }
  func.func @transform_1(%arg0: i32) -> (i32, i32) {
    %c0_i32 = arith.constant 0 : i32
    %c0_i32_0 = arith.constant 0 : i32
    %c0_i32_1 = arith.constant 0 : i32
    return %c0_i32, %c0_i32_0 : i32, i32
  }
  func.func @transform_2(%arg0: i32) -> (i32, i32) {
    %c0_i32 = arith.constant 0 : i32
    %c0_i32_0 = arith.constant 0 : i32
    %c0_i32_1 = arith.constant 0 : i32
    return %c0_i32, %c0_i32_0 : i32, i32
  }
  func.func @transform_3(%arg0: i32) -> (i32, i32) {
    %c0_i32 = arith.constant 0 : i32
    %c0_i32_0 = arith.constant 0 : i32
    %c0_i32_1 = arith.constant 0 : i32
    return %c0_i32, %c0_i32_0 : i32, i32
  }
  func.func @transform_4(%arg0: i32) -> (i32, i32) {
    %c0_i32 = arith.constant 0 : i32
    %c0_i32_0 = arith.constant 0 : i32
    %c0_i32_1 = arith.constant 0 : i32
    return %c0_i32, %c0_i32_0 : i32, i32
  }
  func.func @transform_5(%arg0: i32) -> (i32, i32) {
    %c0_i32 = arith.constant 0 : i32
    %c0_i32_0 = arith.constant 0 : i32
    %c0_i32_1 = arith.constant 0 : i32
    return %c0_i32, %c0_i32_0 : i32, i32
  }
  func.func @transform_6(%arg0: i32) -> (i32, i32) {
    %c0_i32 = arith.constant 0 : i32
    %c0_i32_0 = arith.constant 0 : i32
    %c0_i32_1 = arith.constant 0 : i32
    return %c0_i32, %c0_i32_0 : i32, i32
  }
  func.func @transform_7(%arg0: i32) -> (i32, i32) {
    %c0_i32 = arith.constant 0 : i32
    %c0_i32_0 = arith.constant 0 : i32
    return %arg0, %c0_i32 : i32, i32
  }
  func.func @transform_8(%arg0: i32) -> (i32, i32) {
    %c0_i32 = arith.constant 0 : i32
    %c0_i32_0 = arith.constant 0 : i32
    return %arg0, %c0_i32 : i32, i32
  }
  func.func @transform_9(%arg0: i32) -> (i32, i32) {
    %c0_i32 = arith.constant 0 : i32
    %c0_i32_0 = arith.constant 0 : i32
    return %arg0, %c0_i32 : i32, i32
  }
}

</mosaic_0001>

<llo_original>
// kernel: tpu_custom_call.1
$region0: #{tpu_custom_call.1}
  #allocation0 [shape = 'u32[]', space=smem, size = 0x4, offset = 0x4, fixed_abs, tag = 'smem constant byte address 0x4 - core index']
  #allocation1 [shape = 'u32[144,128]{1,0:T(1,128)}', space=vmem, size = 0x12000, scoped, tag = 'internal scratch']
  %s0 = inlined_call_operand.vmem [shape: f32[8,32], index: 0, kind: input, shape index: {}]
  %s1 = inlined_call_operand.vmem [shape: f32[32,16], index: 1, kind: input, shape index: {}]
  %s2 = inlined_call_operand.hbm [shape: f32[1,16], index: 2, kind: input, shape index: {}]
  %s3 = inlined_call_operand.vmem [shape: f32[16,16], index: 3, kind: input, shape index: {}]
  %s4 = inlined_call_operand.hbm [shape: f32[1,16], index: 4, kind: input, shape index: {}]
  %s5 = inlined_call_operand.vmem [shape: f32[16,256], index: 5, kind: input, shape index: {}]
  %s6 = inlined_call_operand.vmem [shape: f32[1,256], index: 6, kind: input, shape index: {}]
  %s7 = inlined_call_operand.vmem [shape: f32[8,128], index: 7, kind: input, shape index: {}]
  %s8 = inlined_call_operand.hbm [shape: f32[8,128], index: 8, kind: output, shape index: {0}]
  %s9 = inlined_call_operand.hbm [shape: f32[1,1], index: 9, kind: output, shape index: {1}]
  %10 = xla_tuple %s8, %s9
  %s11 = sld [smem:[#allocation0]]
  $region58: #{tpu_custom_call.1} parent=0
    _
  %s13 = ssub.s32 1, %s11
  %s14 = scalar_select 0, %s13, %s11
  $region1: #{tpu_custom_call.1} parent=0
    #allocation2 [shape = 'u8[512]{0}', space=vmem, size = 0x400, scoped, tag = 'input window, operand 2, single buffered']
    #allocation3 [shape = 's32[1]{0}', space=sflag, size = 0x4, scoped, tag = 'scoped memory for tpu_custom_call.1']
    #allocation4 [shape = 's32[1]{0}', space=sflag, size = 0x4, scoped, tag = 'scoped memory for tpu_custom_call.1']
    #allocation5 [shape = 's32[1]{0}', space=sflag, size = 0x4, scoped, tag = 'scoped memory for tpu_custom_call.1']
    #allocation6 [shape = 'u8[512]{0}', space=vmem, size = 0x400, scoped, tag = 'input window, operand 4, single buffered']
    #allocation7 [shape = 's32[1]{0}', space=sflag, size = 0x4, scoped, tag = 'scoped memory for tpu_custom_call.1']
    #allocation8 [shape = 'u8[4096]{0}', space=vmem, size = 0x1000, scoped, tag = 'output window, operand 0, single buffered']
    #allocation9 [shape = 'u8[512]{0}', space=smem, size = 0x200, scoped, tag = 'output window, operand 1, single buffered']
    %15 = vsyncpa [#allocation3], 0
    %16 = vsyncpa [#allocation7], 0
    %17 = vsyncpa [#allocation4], 0
    %18 = vsyncpa [#allocation5], 0
    // Predicated region
    $region2: #{tpu_custom_call.1} parent=1 // pred_check
      _
    $region3: #{tpu_custom_call.1} parent=1 // pred_check_branch
      %20 = sbr.rel (0) target = $region5
    $region4: #{tpu_custom_call.1} parent=1 // pred_region
      _
    $region5: #{tpu_custom_call.1} parent=1 // pred_fallthru
      _
    // Predicated region
    $region6: #{tpu_custom_call.1} parent=1 // pred_check
      _
    $region7: #{tpu_custom_call.1} parent=1 // pred_check_branch
      %22 = sbr.rel (0) target = $region9
    $region8: #{tpu_custom_call.1} parent=1 // pred_region
      _
    $region9: #{tpu_custom_call.1} parent=1 // pred_fallthru
      _
    // Predicated region
    $region10: #{tpu_custom_call.1} parent=1 // pred_check
      _
    $region11: #{tpu_custom_call.1} parent=1 // pred_check_branch
      %24 = sbr.rel (0) target = $region13
    $region12: #{tpu_custom_call.1} parent=1 // pred_region
      %s26 = ssub.s32 16, 16
      %27 = vsyncadd [#allocation3], %s26
      %s29 = sshll.u32 [#allocation2], 4
      %s30 = int_to_ptr.vmem [resolvable:$true] %s29
      %32 = dma.hbm_to_vmem [thread:$0]  %s2, 16, %s30, [#allocation3]
    $region13: #{tpu_custom_call.1} parent=1 // pred_fallthru
      _
    // Predicated region
    $region14: #{tpu_custom_call.1} parent=1 // pred_check
      _
    $region15: #{tpu_custom_call.1} parent=1 // pred_check_branch
      %34 = sbr.rel (0) target = $region17
    $region16: #{tpu_custom_call.1} parent=1 // pred_region
      _
    $region17: #{tpu_custom_call.1} parent=1 // pred_fallthru
      _
    // Predicated region
    $region18: #{tpu_custom_call.1} parent=1 // pred_check
      _
    $region19: #{tpu_custom_call.1} parent=1 // pred_check_branch
      %36 = sbr.rel (0) target = $region21
    $region20: #{tpu_custom_call.1} parent=1 // pred_region
      %s38 = ssub.s32 16, 16
      %39 = vsyncadd [#allocation7], %s38
      %s41 = sshll.u32 [#allocation6], 4
      %s42 = int_to_ptr.vmem [resolvable:$true] %s41
      %44 = dma.hbm_to_vmem [thread:$0]  %s4, 16, %s42, [#allocation7]
    $region21: #{tpu_custom_call.1} parent=1 // pred_fallthru
      _
    // Predicated region
    $region22: #{tpu_custom_call.1} parent=1 // pred_check
      _
    $region23: #{tpu_custom_call.1} parent=1 // pred_check_branch
      %46 = sbr.rel (0) target = $region25
    $region24: #{tpu_custom_call.1} parent=1 // pred_region
      _
    $region25: #{tpu_custom_call.1} parent=1 // pred_fallthru
      _
    // Predicated region
    $region26: #{tpu_custom_call.1} parent=1 // pred_check
      _
    $region27: #{tpu_custom_call.1} parent=1 // pred_check_branch
      %48 = sbr.rel (0) target = $region29
    $region28: #{tpu_custom_call.1} parent=1 // pred_region
      _
    $region29: #{tpu_custom_call.1} parent=1 // pred_fallthru
      _
    // Predicated region
    $region30: #{tpu_custom_call.1} parent=1 // pred_check
      _
    $region31: #{tpu_custom_call.1} parent=1 // pred_check_branch
      %50 = sbr.rel (0) target = $region33
    $region32: #{tpu_custom_call.1} parent=1 // pred_region
      _
    $region33: #{tpu_custom_call.1} parent=1 // pred_fallthru
      _
    // Predicated region
    $region34: #{tpu_custom_call.1} parent=1 // pred_check
      _
    $region35: #{tpu_custom_call.1} parent=1 // pred_check_branch
      %52 = sbr.rel (0) target = $region37
    $region36: #{tpu_custom_call.1} parent=1 // pred_region
      %53 = dma.done [#allocation3], 16
    $region37: #{tpu_custom_call.1} parent=1 // pred_fallthru
      _
    // Predicated region
    $region38: #{tpu_custom_call.1} parent=1 // pred_check
      _
    $region39: #{tpu_custom_call.1} parent=1 // pred_check_branch
      %55 = sbr.rel (0) target = $region41
    $region40: #{tpu_custom_call.1} parent=1 // pred_region
      %56 = dma.done [#allocation7], 16
    $region41: #{tpu_custom_call.1} parent=1 // pred_fallthru
      _
    %v57 = vld [vmem:[%s0] sm:$0xff]
    %v58 = vld [vmem:[%s1] sm:$0xff]
    %v59 = vld [vmem:[%s1 + $0x8] sm:$0xff]
    %v60 = vld [vmem:[%s1 + $0x10] sm:$0xff]
    %v61 = vld [vmem:[%s1 + $0x18] sm:$0xff]
    %v62 = vld [vmem:[#allocation2] sm:$0x1]
    %v64 = vlaneseq
    %v65 = vshrl.u32 %v64, 7
    %v66 = vsub.s32 0, %v65
    %v67 = vrot.slane %v62, %v66
    %vm69 = vcmask 261120
    %v71 = vsel %vm69, %v57, 0
    %73 = vmatprep.subr.mxu0 0.0
    %74 = vmatpush1.msra.mxu0 %v58
    %75 = vmatprep.subr.mxu0 0.0
    %76 = vmatpush1.msra.mxu0 %v59
    %77 = vmatprep.subr.mxu0 0.0
    %78 = vmatpush1.msra.mxu0 %v60
    %79 = vmatprep.subr.mxu0 0.0
    %80 = vmatpush1.msra.mxu0 %v61
    %81 = vmatprep.subr.mxu0 0.0
    %82 = vmatpush1.msra.mxu0 0.0
    %83 = vmatprep.subr.mxu0 0.0
    %84 = vmatpush1.msra.mxu0 0.0
    %85 = vmatprep.subr.mxu0 0.0
    %86 = vmatpush1.msra.mxu0 0.0
    %87 = vmatprep.subr.mxu0 0.0
    %88 = vmatpush1.msra.mxu0 0.0
    %89 = vmatprep.subr.mxu0 0.0
    %90 = vmatpush1.msra.mxu0 0.0
    %91 = vmatprep.subr.mxu0 0.0
    %92 = vmatpush1.msra.mxu0 0.0
    %93 = vmatprep.subr.mxu0 0.0
    %94 = vmatpush1.msra.mxu0 0.0
    %95 = vmatprep.subr.mxu0 0.0
    %96 = vmatpush1.msra.mxu0 0.0
    %97 = vmatprep.subr.mxu0 0.0
    %98 = vmatpush1.msra.mxu0 0.0
    %99 = vmatprep.subr.mxu0 0.0
    %100 = vmatpush1.msra.mxu0 0.0
    %101 = vmatprep.subr.mxu0 0.0
    %102 = vmatpush1.msra.mxu0 0.0
    %103 = vmatprep.subr.mxu0 0.0
    %104 = vmatpush1.msra.mxu0 0.0
    %105 = vmatprep.subr.mxu0 0.0
    %106 = vmatpush1.msra.mxu0 0.0
    %107 = vmatprep.subr.mxu0 0.0
    %108 = vmatpush1.msra.mxu0 0.0
    %109 = vmatprep.subr.mxu0 0.0
    %110 = vmatpush1.msra.mxu0 0.0
    %111 = vmatprep.subr.mxu0 0.0
    %112 = vmatpush1.msra.mxu0 0.0
    %113 = vmatprep.subr.mxu0 0.0
    %114 = vmatpush1.msra.mxu0 0.0
    %115 = vmatprep.subr.mxu0 0.0
    %116 = vmatpush1.msra.mxu0 0.0
    %117 = vmatprep.subr.mxu0 0.0
    %118 = vmatpush1.msra.mxu0 0.0
    %119 = vmatprep.subr.mxu0 0.0
    %120 = vmatpush1.msra.mxu0 0.0
    %121 = vmatprep.subr.mxu0 0.0
    %122 = vmatpush1.msra.mxu0 0.0
    %123 = vmatprep.subr.mxu0 0.0
    %124 = vmatpush1.msra.mxu0 0.0
    %125 = vmatprep.subr.mxu0 0.0
    %126 = vmatpush1.msra.mxu0 0.0
    %127 = vmatprep.subr.mxu0 0.0
    %128 = vmatpush1.msra.mxu0 0.0
    %129 = vmatprep.subr.mxu0 0.0
    %130 = vmatpush1.msra.mxu0 0.0
    %131 = vmatprep.subr.mxu0 0.0
    %132 = vmatpush1.msra.mxu0 0.0
    %133 = vmatprep.subr.mxu0 0.0
    %134 = vmatpush1.msra.mxu0 0.0
    %135 = vmatprep.subr.mxu0 0.0
    %136 = vmatpush1.msra.mxu0 0.0
    %137 = vmatprep.mubr.f32.mxu0 0.0
    %138 = vmatmul.mubr.f32.gmra.mrb[0].mxu0 %v71
    %v139 = vpop.f32.mrb[0].mxu0
    %v140 = vadd.f32 %v67, %v139
    %v141 = vpop.f32.mrb[0].mxu0
    %142 = vdwg.mxu0
    %v143 = vmax.f32 %v140, 0.0
    %v144 = vld [vmem:[%s3] sm:$0xff]
    %v145 = vld [vmem:[%s3 + $0x8] sm:$0xff]
    %v146 = vld [vmem:[#allocation6] sm:$0x1]
    %v148 = vlaneseq
    %v149 = vshrl.u32 %v148, 7
    %v150 = vsub.s32 0, %v149
    %v151 = vrot.slane %v146, %v150
    %vm153 = vcmask 130048
    %v155 = vsel %vm153, %v143, 0
    %157 = vmatprep.subr.mxu0 0.0
    %158 = vmatpush1.msra.mxu0 %v144
    %159 = vmatprep.subr.mxu0 0.0
    %160 = vmatpush1.msra.mxu0 %v145
    %161 = vmatprep.subr.mxu0 0.0
    %162 = vmatpush1.msra.mxu0 0.0
    %163 = vmatprep.subr.mxu0 0.0
    %164 = vmatpush1.msra.mxu0 0.0
    %165 = vmatprep.subr.mxu0 0.0
    %166 = vmatpush1.msra.mxu0 0.0
    %167 = vmatprep.subr.mxu0 0.0
    %168 = vmatpush1.msra.mxu0 0.0
    %169 = vmatprep.subr.mxu0 0.0
    %170 = vmatpush1.msra.mxu0 0.0
    %171 = vmatprep.subr.mxu0 0.0
    %172 = vmatpush1.msra.mxu0 0.0
    %173 = vmatprep.subr.mxu0 0.0
    %174 = vmatpush1.msra.mxu0 0.0
    %175 = vmatprep.subr.mxu0 0.0
    %176 = vmatpush1.msra.mxu0 0.0
    %177 = vmatprep.subr.mxu0 0.0
    %178 = vmatpush1.msra.mxu0 0.0
    %179 = vmatprep.subr.mxu0 0.0
    %180 = vmatpush1.msra.mxu0 0.0
    %181 = vmatprep.subr.mxu0 0.0
    %182 = vmatpush1.msra.mxu0 0.0
    %183 = vmatprep.subr.mxu0 0.0
    %184 = vmatpush1.msra.mxu0 0.0
    %185 = vmatprep.subr.mxu0 0.0
    %186 = vmatpush1.msra.mxu0 0.0
    %187 = vmatprep.subr.mxu0 0.0
    %188 = vmatpush1.msra.mxu0 0.0
    %189 = vmatprep.subr.mxu0 0.0
    %190 = vmatpush1.msra.mxu0 0.0
    %191 = vmatprep.subr.mxu0 0.0
    %192 = vmatpush1.msra.mxu0 0.0
    %193 = vmatprep.subr.mxu0 0.0
    %194 = vmatpush1.msra.mxu0 0.0
    %195 = vmatprep.subr.mxu0 0.0
    %196 = vmatpush1.msra.mxu0 0.0
    %197 = vmatprep.subr.mxu0 0.0
    %198 = vmatpush1.msra.mxu0 0.0
    %199 = vmatprep.subr.mxu0 0.0
    %200 = vmatpush1.msra.mxu0 0.0
    %201 = vmatprep.subr.mxu0 0.0
    %202 = vmatpush1.msra.mxu0 0.0
    %203 = vmatprep.subr.mxu0 0.0
    %204 = vmatpush1.msra.mxu0 0.0
    %205 = vmatprep.subr.mxu0 0.0
    %206 = vmatpush1.msra.mxu0 0.0
    %207 = vmatprep.subr.mxu0 0.0
    %208 = vmatpush1.msra.mxu0 0.0
    %209 = vmatprep.subr.mxu0 0.0
    %210 = vmatpush1.msra.mxu0 0.0
    %211 = vmatprep.subr.mxu0 0.0
    %212 = vmatpush1.msra.mxu0 0.0
    %213 = vmatprep.subr.mxu0 0.0
    %214 = vmatpush1.msra.mxu0 0.0
    %215 = vmatprep.subr.mxu0 0.0
    %216 = vmatpush1.msra.mxu0 0.0
    %217 = vmatprep.subr.mxu0 0.0
    %218 = vmatpush1.msra.mxu0 0.0
    %219 = vmatprep.subr.mxu0 0.0
    %220 = vmatpush1.msra.mxu0 0.0
    %221 = vmatprep.mubr.f32.mxu0 0.0
    %222 = vmatmul.mubr.f32.gmra.mrb[0].mxu0 %v155
    %v223 = vpop.f32.mrb[0].mxu0
    %v224 = vadd.f32 %v151, %v223
    %v225 = vpop.f32.mrb[0].mxu0
    %226 = vdwg.mxu0
    %v227 = vmax.f32 %v224, 0.0
    %v228 = vld [vmem:[%s5] sm:$0xff]
    %v229 = vld [vmem:[%s5 + $0x8] sm:$0xff]
    %v230 = vld [vmem:[%s5 + $0x10] sm:$0xff]
    %v231 = vld [vmem:[%s5 + $0x18] sm:$0xff]
    %v232 = vld [vmem:[%s6] sm:$0x3]
    %v234 = vlaneseq
    %v235 = vshrl.u32 %v234, 7
    %v236 = vsub.s32 0, %v235
    %v237 = vrot.slane %v232, %v236
    %v238 = vlaneseq
    %v239 = vshrl.u32 %v238, 7
    %v240 = vsub.s32 1, %v239
    %v241 = vrot.slane %v232, %v240
    %v245 = vsel %vm153, %v227, 0
    %247 = vmatprep.subr.mxu0 %v229
    %248 = vmatpush1.msra.mxu0 %v228
    %249 = vmatprep.subr.mxu0 %v231
    %250 = vmatpush1.msra.mxu0 %v230
    %251 = vmatprep.subr.mxu0 0.0
    %252 = vmatpush1.msra.mxu0 0.0
    %253 = vmatprep.subr.mxu0 0.0
    %254 = vmatpush1.msra.mxu0 0.0
    %255 = vmatprep.subr.mxu0 0.0
    %256 = vmatpush1.msra.mxu0 0.0
    %257 = vmatprep.subr.mxu0 0.0
    %258 = vmatpush1.msra.mxu0 0.0
    %259 = vmatprep.subr.mxu0 0.0
    %260 = vmatpush1.msra.mxu0 0.0
    %261 = vmatprep.subr.mxu0 0.0
    %262 = vmatpush1.msra.mxu0 0.0
    %263 = vmatprep.subr.mxu0 0.0
    %264 = vmatpush1.msra.mxu0 0.0
    %265 = vmatprep.subr.mxu0 0.0
    %266 = vmatpush1.msra.mxu0 0.0
    %267 = vmatprep.subr.mxu0 0.0
    %268 = vmatpush1.msra.mxu0 0.0
    %269 = vmatprep.subr.mxu0 0.0
    %270 = vmatpush1.msra.mxu0 0.0
    %271 = vmatprep.subr.mxu0 0.0
    %272 = vmatpush1.msra.mxu0 0.0
    %273 = vmatprep.subr.mxu0 0.0
    %274 = vmatpush1.msra.mxu0 0.0
    %275 = vmatprep.subr.mxu0 0.0
    %276 = vmatpush1.msra.mxu0 0.0
    %277 = vmatprep.subr.mxu0 0.0
    %278 = vmatpush1.msra.mxu0 0.0
    %279 = vmatprep.subr.mxu0 0.0
    %280 = vmatpush1.msra.mxu0 0.0
    %281 = vmatprep.subr.mxu0 0.0
    %282 = vmatpush1.msra.mxu0 0.0
    %283 = vmatprep.subr.mxu0 0.0
    %284 = vmatpush1.msra.mxu0 0.0
    %285 = vmatprep.subr.mxu0 0.0
    %286 = vmatpush1.msra.mxu0 0.0
    %287 = vmatprep.subr.mxu0 0.0
    %288 = vmatpush1.msra.mxu0 0.0
    %289 = vmatprep.subr.mxu0 0.0
    %290 = vmatpush1.msra.mxu0 0.0
    %291 = vmatprep.subr.mxu0 0.0
    %292 = vmatpush1.msra.mxu0 0.0
    %293 = vmatprep.subr.mxu0 0.0
    %294 = vmatpush1.msra.mxu0 0.0
    %295 = vmatprep.subr.mxu0 0.0
    %296 = vmatpush1.msra.mxu0 0.0
    %297 = vmatprep.subr.mxu0 0.0
    %298 = vmatpush1.msra.mxu0 0.0
    %299 = vmatprep.subr.mxu0 0.0
    %300 = vmatpush1.msra.mxu0 0.0
    %301 = vmatprep.subr.mxu0 0.0
    %302 = vmatpush1.msra.mxu0 0.0
    %303 = vmatprep.subr.mxu0 0.0
    %304 = vmatpush1.msra.mxu0 0.0
    %305 = vmatprep.subr.mxu0 0.0
    %306 = vmatpush1.msra.mxu0 0.0
    %307 = vmatprep.subr.mxu0 0.0
    %308 = vmatpush1.msra.mxu0 0.0
    %309 = vmatprep.subr.mxu0 0.0
    %310 = vmatpush1.msra.mxu0 0.0
    %311 = vmatprep.mubr.f32.mxu0 0.0
    %312 = vmatmul.mubr.f32.gmra.mrb[0].mxu0 %v245
    %v313 = vpop.f32.mrb[0].mxu0
    %v314 = vadd.f32 %v237, %v313
    %v315 = vpop.f32.mrb[0].mxu0
    %v316 = vadd.f32 %v241, %v315
    %317 = vdwg.mxu0
    %v318 = vmul.f32 %v316, 1.442695
    %v319 = vpow.pop %v318
    %v320 = vld [vmem:[%s7] sm:$0xff]
    %v321 = vmul.f32 %v319, %v320
    %v322 = vadd.f32 %v314, %v321
    %323 = vst [vmem:[#allocation8] sm:$0xff] %v322
    %v324 = vlaneseq
    %v325 = vshrl.u32 %v324, 7
    %s326 = smul.u32 0, 8
    %v327 = vstv %s326
    %v328 = vadd.s32 %v325, %v327
    %v329 = vlaneseq
    %v330 = vand.u32 %v329, 127
    %vm331 = vcmp.lt.s32.totalorder %v328, 8
    %vm332 = vcmp.lt.s32.totalorder %v330, 8
    %vm333 = vmand %vm331, %vm332
    %v334 = vmul.f32 %v319, %v319
    %v335 = vmul.f32 %v314, %v314
    %v336 = vadd.f32 %v334, %v335
    %v337 = vsub.f32 %v336, %v316
    %v338 = vsub.f32 %v337, 0.5
    %v339 = vsel %vm333, %v338, 0.0
    %340 = vadd.xlane.f32.xlu0 %v339
    %v341 = vpop.xlane.xlu0 %340
    %v342 = vrot.slane %v341, 4
    %v343 = vadd.f32 %v341, %v342
    %v344 = vrot.slane %v343, 2
    %v345 = vadd.f32 %v343, %v344
    %v346 = vrot.slane %v345, 1
    %v347 = vadd.f32 %v345, %v346
    %s348 = vtos %v347
    %s349 = scalar_lea.smem [#allocation9], 0
    %350 = sst [smem:[%s349]] %s348
    // Predicated region
    $region42: #{tpu_custom_call.1} parent=1 // pred_check
      _
    $region43: #{tpu_custom_call.1} parent=1 // pred_check_branch
      %352 = sbr.rel (0) target = $region45
    $region44: #{tpu_custom_call.1} parent=1 // pred_region
      %s354 = ssub.s32 128, 128
      %355 = vsyncadd [#allocation4], %s354
      %s357 = sshll.u32 [#allocation8], 4
      %s358 = int_to_ptr.vmem [resolvable:$true] %s357
      %360 = dma.vmem_to_hbm [thread:$0]  %s358, 128, %s8, [#allocation4]
    $region45: #{tpu_custom_call.1} parent=1 // pred_fallthru
      _
    // Predicated region
    $region46: #{tpu_custom_call.1} parent=1 // pred_check
      _
    $region47: #{tpu_custom_call.1} parent=1 // pred_check_branch
      %362 = sbr.rel (0) target = $region49
    $region48: #{tpu_custom_call.1} parent=1 // pred_region
      %s364 = ssub.s32 16, 16
      %365 = vsyncadd [#allocation5], %s364
      %368 = dma.smem_to_hbm [#allocation9], 16, %s9, [#allocation5]
    $region49: #{tpu_custom_call.1} parent=1 // pred_fallthru
      _
    // Predicated region
    $region50: #{tpu_custom_call.1} parent=1 // pred_check
      _
    $region51: #{tpu_custom_call.1} parent=1 // pred_check_branch
      %370 = sbr.rel (0) target = $region53
    $region52: #{tpu_custom_call.1} parent=1 // pred_region
      %371 = dma.done [#allocation4], 128
    $region53: #{tpu_custom_call.1} parent=1 // pred_fallthru
      _
    // Predicated region
    $region54: #{tpu_custom_call.1} parent=1 // pred_check
      _
    $region55: #{tpu_custom_call.1} parent=1 // pred_check_branch
      %373 = sbr.rel (0) target = $region57
    $region56: #{tpu_custom_call.1} parent=1 // pred_region
      %374 = dma.done [#allocation5], 16
    $region57: #{tpu_custom_call.1} parent=1 // pred_fallthru
      _
    %375 = sfence
    %376 = vsyncpa [#allocation3], 1
    %377 = vsyncpa [#allocation7], 1
    %378 = vsyncpa [#allocation4], 1
    %379 = vsyncpa [#allocation5], 1

</llo_original>
